<compile_context>
chip_gen: v7x
topology: tpu7x:2x2x1
jax: 0.10.0
libtpu: 0.0.40
codegen_flags: <defaults>
</compile_context>

<pallas_src>
import functools

import jax
import jax.numpy as jnp
from jax import lax
from jax.experimental import pallas as pl
from jax.experimental.pallas import tpu as pltpu

BN_EPS = 1e-5
MAX_TILE_B = 8192          # max rows of x per grid step (lane dim of the output block)
LANE = 128
VMEM_LIMIT_BYTES = 48 << 20  # explicit scoped-VMEM budget; < v7x's 64 MiB physical


def _cdiv(a, b):
    return -(-a // b)


def _round_up(n, m):
    return _cdiv(n, m) * m


def _mlp_kernel(h1_dim, h2_dim, out_dim,
                x_ref, w1t_ref, w2t_ref, w3t_ref, b_ref, o_ref):
    """Fused 3-layer MLP computed batch-on-lanes (BN already folded into W2/W3).

    All activations are kept transposed, (features, tile_b), so the output block
    is a lane-dense (d_out, tile_b) slab -> unmasked full-lane stores.
    """
    x = x_ref[...]                                    # (tile_b, D_in)

    # Packed bias columns: col 0 = b1, col 1 = b2', col 2 = b3'.
    b1 = b_ref[0:h1_dim, 0:1]                         # (H1, 1)
    b2 = b_ref[0:h2_dim, 1:2]                         # (H2, 1)
    b3 = b_ref[0:out_dim, 2:3]                        # (D_out, 1)

    # layer_1 + ReLU:  h1 = W1^T @ x^T computed as a trans_b contraction
    # (contract W1^T dim 1 with x dim 1) -> (H1, tile_b); x is never transposed.
    h1 = lax.dot_general(w1t_ref[...], x, (((1,), (1,)), ((), ())),
                         preferred_element_type=jnp.float32) + b1
    h1 = jnp.maximum(h1, 0.0)

    # (BN1 folded) layer_2 + ReLU: canonical (H2,H1)@(H1,tile_b).
    h2 = jnp.dot(w2t_ref[...], h1, preferred_element_type=jnp.float32) + b2
    h2 = jnp.maximum(h2, 0.0)

    # (BN2 folded) layer_out + exact sigmoid: (D_out,H2)@(H2,tile_b).
    # TODO(synk): training-mode dropout (p=0.1) would need pltpu.prng_random_bits + mask.
    logits = jnp.dot(w3t_ref[...], h2, preferred_element_type=jnp.float32) + b3
    o_ref[...] = 1.0 / (1.0 + jnp.exp(-logits))       # EUP exp + exact divide


@jax.jit
def churn_model_forward(x, params):
    """x: (B, n_input_dim) float32. Returns (B, n_output) float32 (eval mode)."""
    (w1, b1, g1, be1, m1, v1,
     w2, b2, g2, be2, m2, v2,
     w3, b3) = params

    B, d_in = x.shape
    h1_dim = w1.shape[1]
    h2_dim = w2.shape[1]
    d_out = w3.shape[1]

    # ---- Fold eval-mode BatchNorms into the following Linear layers ----
    # BN(h) = a*h + c with a = g*rsqrt(v+eps), c = be - m*a, so
    # Linear(BN(h)) = h @ (a[:,None]*W) + (b + c@W).
    a1 = g1 * jax.lax.rsqrt(v1 + BN_EPS)              # (1, H1)
    c1 = be1 - m1 * a1                                # (1, H1)
    b2f = b2 + c1 @ w2                                # (1, H2)

    a2 = g2 * jax.lax.rsqrt(v2 + BN_EPS)              # (1, H2)
    c2 = be2 - m2 * a2                                # (1, H2)
    b3f = b3 + c2 @ w3                                # (1, D_out)

    # Pre-transposed (tiny) weights so the kernel works batch-on-lanes with
    # canonical / trans_b matmuls only (no trans_a lowering).
    w1t = w1.T                                        # (H1, D_in)
    w2t = (w2 * a1.reshape(h1_dim, 1)).T              # (H2, H1), BN1 folded
    w3t = (w3 * a2.reshape(h2_dim, 1)).T              # (D_out, H2), BN2 folded

    # ---- Pack the three bias columns into a single small block ----
    h_max = max(h1_dim, h2_dim, d_out)

    def pad_col(b):  # (1, h) -> (h_max, 1)
        return jnp.pad(b.reshape(-1, 1), ((0, h_max - b.shape[1]), (0, 0)))

    b_packed = jnp.concatenate([pad_col(b1), pad_col(b2f), pad_col(b3f)], axis=1)

    # ---- Batch tiling: few, large, evenly sized tiles ----
    #  * grid forced even & >= 2 so both v7x TensorCores get work (one extra
    #    ~0.35us step on single-TC v5e/v6e is negligible).
    #  * tile_b is a multiple of 128: it is the lane dim of the output block.
    n_steps = _cdiv(B, MAX_TILE_B)
    n_steps = max(2, n_steps + (n_steps % 2))
    tile_b = _round_up(_cdiv(B, n_steps), LANE)
    b_pad = n_steps * tile_b
    if b_pad != B:
        x = jnp.pad(x, ((0, b_pad - B), (0, 0)))      # padded rows give garbage
                                                      # outputs, sliced off below

    kernel = functools.partial(_mlp_kernel, h1_dim, h2_dim, d_out)
    rep = lambda i: (0, 0)  # replicated (constant index) blocks -> DMA'd once

    cost = pl.CostEstimate(
        flops=2 * B * (d_in * h1_dim + h1_dim * h2_dim + h2_dim * d_out),
        transcendentals=B * d_out,
        bytes_accessed=4 * (B * (d_in + d_out)
                            + d_in * h1_dim + h1_dim * h2_dim + h2_dim * d_out),
    )

    out_t = pl.pallas_call(
        kernel,
        out_shape=jax.ShapeDtypeStruct((d_out, b_pad), jnp.float32),
        grid_spec=pltpu.PrefetchScalarGridSpec(
            num_scalar_prefetch=0,
            grid=(n_steps,),
            in_specs=[
                pl.BlockSpec((tile_b, d_in), lambda i: (i, 0)),   # x
                pl.BlockSpec((h1_dim, d_in), rep),                # W1^T
                pl.BlockSpec((h2_dim, h1_dim), rep),              # W2'^T (BN1 folded)
                pl.BlockSpec((d_out, h2_dim), rep),               # W3'^T (BN2 folded)
                pl.BlockSpec((h_max, 3), rep),                    # packed bias columns
            ],
            out_specs=pl.BlockSpec((d_out, tile_b), lambda i: (0, i)),  # lane-dense
        ),
        compiler_params=pltpu.CompilerParams(
            dimension_semantics=("parallel",),
            vmem_limit_bytes=VMEM_LIMIT_BYTES,
        ),
        cost_estimate=cost,
    )(x, w1t, w2t, w3t, b_packed)

    # (d_out, b_pad) -> (B, d_out); for d_out=1 the transpose is just a reshape.
    return out_t[:, :B].T


def init_params(key, n_input_dim, n_hidden1=10, n_hidden2=5, n_output=1):
    """Deterministic synthetic parameters, shaped like the PyTorch module."""
    ks = jax.random.split(key, 10)

    def linear(kw, kb, fan_in, fan_out):
        bound = 1.0 / jnp.sqrt(float(fan_in))
        w = jax.random.uniform(kw, (fan_in, fan_out), jnp.float32, -bound, bound)
        b = jax.random.uniform(kb, (1, fan_out), jnp.float32, -bound, bound)
        return w, b

    w1, b1 = linear(ks[0], ks[1], n_input_dim, n_hidden1)
    w2, b2 = linear(ks[2], ks[3], n_hidden1, n_hidden2)
    w3, b3 = linear(ks[4], ks[5], n_hidden2, n_output)

    # BatchNorm1d params + running stats (deterministic, non-trivial).
    g1 = 1.0 + 0.1 * jax.random.normal(ks[6], (1, n_hidden1), jnp.float32)
    be1 = 0.1 * jax.random.normal(ks[7], (1, n_hidden1), jnp.float32)
    m1 = 0.05 * jnp.arange(n_hidden1, dtype=jnp.float32).reshape(1, n_hidden1)
    v1 = 1.0 + 0.01 * jnp.arange(n_hidden1, dtype=jnp.float32).reshape(1, n_hidden1)

    g2 = 1.0 + 0.1 * jax.random.normal(ks[8], (1, n_hidden2), jnp.float32)
    be2 = 0.1 * jax.random.normal(ks[9], (1, n_hidden2), jnp.float32)
    m2 = 0.05 * jnp.arange(n_hidden2, dtype=jnp.float32).reshape(1, n_hidden2)
    v2 = 1.0 + 0.01 * jnp.arange(n_hidden2, dtype=jnp.float32).reshape(1, n_hidden2)

    return (w1, b1, g1, be1, m1, v1,
            w2, b2, g2, be2, m2, v2,
            w3, b3)


def _reference_forward(x, params):
    """Pure-JAX reference of the eval-mode forward (unfused BN, exact sigmoid)."""
    (w1, b1, g1, be1, m1, v1,
     w2, b2, g2, be2, m2, v2,
     w3, b3) = params
    h = jnp.maximum(x @ w1 + b1, 0.0)
    h = (h - m1) / jnp.sqrt(v1 + BN_EPS) * g1 + be1
    h = jnp.maximum(h @ w2 + b2, 0.0)
    h = (h - m2) / jnp.sqrt(v2 + BN_EPS) * g2 + be2
    return jax.nn.sigmoid(h @ w3 + b3)


if __name__ == "__main__":
    key = jax.random.PRNGKey(0)
    k_param, k_x1, k_x2 = jax.random.split(key, 3)

    n_input_dim = 12
    params = init_params(k_param, n_input_dim, n_hidden1=10, n_hidden2=5, n_output=1)

    # Small demo batch (grid of 2 tiny tiles).
    batch = 2
    x = jax.random.normal(k_x1, (batch, n_input_dim), jnp.float32)
    out = jax.block_until_ready(churn_model_forward(x, params))
    ref = _reference_forward(x, params)
    assert out.shape == (batch, 1), out.shape
    assert jnp.allclose(out, ref, atol=1e-4, rtol=1e-4), (out, ref)

    # Larger batch: exercises multi-step grid, lane-aligned tiles, padding slice-off.
    batch2 = 600
    x2 = jax.random.normal(k_x2, (batch2, n_input_dim), jnp.float32)
    out2 = jax.block_until_ready(churn_model_forward(x2, params))
    ref2 = _reference_forward(x2, params)
    assert out2.shape == (batch2, 1), out2.shape
    assert jnp.allclose(out2, ref2, atol=1e-4, rtol=1e-4)

    print("KERNEL_OK")
</pallas_src>

<mosaic_0001>
module attributes {stable_mosaic.version = 11 : i64} {
  func.func @_mlp_kernel(%arg0: i32, %arg1: memref<128x12xf32, #tpu.memory_space<vmem>>, %arg2: memref<10x12xf32, #tpu.memory_space<vmem>>, %arg3: memref<5x10xf32, #tpu.memory_space<vmem>>, %arg4: memref<1x5xf32, #tpu.memory_space<vmem>>, %arg5: memref<10x3xf32, #tpu.memory_space<vmem>>, %arg6: memref<1x128xf32, #tpu.memory_space<vmem>>) attributes {dimension_semantics = [#tpu.dimension_semantics<parallel>], iteration_bounds = array<i64: 2>, scalar_prefetch = 0 : i64, scratch_operands = 0 : i64, tpu.core_type = #tpu.core_type<tc>, window_params = [{transform_indices = @transform_0, window_bounds = array<i64: 128, 12>}, {pipeline_mode = #tpu.pipeline_mode<synchronous>, transform_indices = @transform_1, window_bounds = array<i64: 10, 12>}, {pipeline_mode = #tpu.pipeline_mode<synchronous>, transform_indices = @transform_2, window_bounds = array<i64: 5, 10>}, {pipeline_mode = #tpu.pipeline_mode<synchronous>, transform_indices = @transform_3, window_bounds = array<i64: 1, 5>}, {pipeline_mode = #tpu.pipeline_mode<synchronous>, transform_indices = @transform_4, window_bounds = array<i64: 10, 3>}, {transform_indices = @transform_5, window_bounds = array<i64: 1, 128>}]} {
    %c0 = arith.constant 0 : index
    %c0_0 = arith.constant 0 : index
    %0 = vector.load %arg1[%c0, %c0_0] : memref<128x12xf32, #tpu.memory_space<vmem>>, vector<128x12xf32>
    %c0_1 = arith.constant 0 : index
    %c0_2 = arith.constant 0 : index
    %1 = vector.load %arg5[%c0_1, %c0_2] : memref<10x3xf32, #tpu.memory_space<vmem>>, vector<10x1xf32>
    %c0_3 = arith.constant 0 : index
    %c1 = arith.constant 1 : index
    %2 = vector.load %arg5[%c0_3, %c1] : memref<10x3xf32, #tpu.memory_space<vmem>>, vector<5x1xf32>
    %c0_4 = arith.constant 0 : index
    %c2 = arith.constant 2 : index
    %3 = vector.load %arg5[%c0_4, %c2] : memref<10x3xf32, #tpu.memory_space<vmem>>, vector<1x1xf32>
    %c0_5 = arith.constant 0 : index
    %c0_6 = arith.constant 0 : index
    %4 = vector.load %arg2[%c0_5, %c0_6] : memref<10x12xf32, #tpu.memory_space<vmem>>, vector<10x12xf32>
    %cst = arith.constant dense<0.000000e+00> : vector<10x128xf32>
    %5 = tpu.matmul %4, %0, %cst {dimension_numbers = #tpu.dot_dimension_numbers<[1], [1], [0], [0], [0, 0, 1, 0], [], []>} : vector<10x12xf32>, vector<128x12xf32>, vector<10x128xf32> -> vector<10x128xf32>
    %6 = vector.broadcast %1 : vector<10x1xf32> to vector<10x128xf32>
    %7 = arith.addf %5, %6 : vector<10x128xf32>
    %cst_7 = arith.constant 0.000000e+00 : f32
    %8 = vector.broadcast %cst_7 : f32 to vector<10x128xf32>
    %9 = arith.maximumf %7, %8 : vector<10x128xf32>
    %c0_8 = arith.constant 0 : index
    %c0_9 = arith.constant 0 : index
    %10 = vector.load %arg3[%c0_8, %c0_9] : memref<5x10xf32, #tpu.memory_space<vmem>>, vector<5x10xf32>
    %cst_10 = arith.constant dense<0.000000e+00> : vector<5x128xf32>
    %11 = tpu.matmul %10, %9, %cst_10 {dimension_numbers = #tpu.dot_dimension_numbers<[1], [0], [0], [1], [0, 0, 1, 1], [], []>} : vector<5x10xf32>, vector<10x128xf32>, vector<5x128xf32> -> vector<5x128xf32>
    %12 = vector.broadcast %2 : vector<5x1xf32> to vector<5x128xf32>
    %13 = arith.addf %11, %12 : vector<5x128xf32>
    %cst_11 = arith.constant 0.000000e+00 : f32
    %14 = vector.broadcast %cst_11 : f32 to vector<5x128xf32>
    %15 = arith.maximumf %13, %14 : vector<5x128xf32>
    %c0_12 = arith.constant 0 : index
    %c0_13 = arith.constant 0 : index
    %16 = vector.load %arg4[%c0_12, %c0_13] : memref<1x5xf32, #tpu.memory_space<vmem>>, vector<1x5xf32>
    %cst_14 = arith.constant dense<0.000000e+00> : vector<1x128xf32>
    %17 = tpu.matmul %16, %15, %cst_14 {dimension_numbers = #tpu.dot_dimension_numbers<[1], [0], [0], [1], [0, 0, 1, 1], [], []>} : vector<1x5xf32>, vector<5x128xf32>, vector<1x128xf32> -> vector<1x128xf32>
    %18 = vector.broadcast %3 : vector<1x1xf32> to vector<1x128xf32>
    %19 = arith.addf %17, %18 : vector<1x128xf32>
    %cst_15 = arith.constant 0.000000e+00 : f32
    %20 = vector.broadcast %cst_15 : f32 to vector<1x128xf32>
    %21 = arith.subf %20, %19 : vector<1x128xf32>
    %22 = math.exp %21 : vector<1x128xf32>
    %cst_16 = arith.constant 1.000000e+00 : f32
    %23 = vector.broadcast %cst_16 : f32 to vector<1x128xf32>
    %24 = arith.addf %23, %22 : vector<1x128xf32>
    %cst_17 = arith.constant 1.000000e+00 : f32
    %25 = vector.broadcast %cst_17 : f32 to vector<1x128xf32>
    %26 = arith.divf %25, %24 : vector<1x128xf32>
    %c0_18 = arith.constant 0 : index
    %c0_19 = arith.constant 0 : index
    %27 = vector.load %arg6[%c0_18, %c0_19] : memref<1x128xf32, #tpu.memory_space<vmem>>, vector<1x128xf32>
    tpu.vector_store %arg6[%c0_18, %c0_19], %26 {strides = array<i32>} : memref<1x128xf32, #tpu.memory_space<vmem>>, vector<1x128xf32>,
    return
  }
  func.func @transform_0(%arg0: i32) -> (i32, i32) {
    %c0_i32 = arith.constant 0 : i32
    %c0_i32_0 = arith.constant 0 : i32
    return %arg0, %c0_i32 : i32, i32
  }
  func.func @transform_1(%arg0: i32) -> (i32, i32) {
    %c0_i32 = arith.constant 0 : i32
    %c0_i32_0 = arith.constant 0 : i32
    %c0_i32_1 = arith.constant 0 : i32
    return %c0_i32, %c0_i32_0 : i32, i32
  }
  func.func @transform_2(%arg0: i32) -> (i32, i32) {
    %c0_i32 = arith.constant 0 : i32
    %c0_i32_0 = arith.constant 0 : i32
    %c0_i32_1 = arith.constant 0 : i32
    return %c0_i32, %c0_i32_0 : i32, i32
  }
  func.func @transform_3(%arg0: i32) -> (i32, i32) {
    %c0_i32 = arith.constant 0 : i32
    %c0_i32_0 = arith.constant 0 : i32
    %c0_i32_1 = arith.constant 0 : i32
    return %c0_i32, %c0_i32_0 : i32, i32
  }
  func.func @transform_4(%arg0: i32) -> (i32, i32) {
    %c0_i32 = arith.constant 0 : i32
    %c0_i32_0 = arith.constant 0 : i32
    %c0_i32_1 = arith.constant 0 : i32
    return %c0_i32, %c0_i32_0 : i32, i32
  }
  func.func @transform_5(%arg0: i32) -> (i32, i32) {
    %c0_i32 = arith.constant 0 : i32
    %c0_i32_0 = arith.constant 0 : i32
    return %c0_i32, %arg0 : i32, i32
  }
}

</mosaic_0001>

<llo_original>
// kernel: churn_model_forward.1
$region0: #{churn_model_forward.1}
  #allocation0 [shape = 'u32[]', space=smem, size = 0x4, offset = 0x4, fixed_abs, tag = 'smem constant byte address 0x4 - core index']
  #allocation1 [shape = 'u32[144,128]{1,0:T(1,128)}', space=vmem, size = 0x12000, scoped, tag = 'internal scratch']
  %s0 = inlined_call_operand.vmem [shape: f32[256,12], index: 0, kind: input, shape index: {}]
  %s1 = inlined_call_operand.vmem [shape: f32[10,12], index: 1, kind: input, shape index: {}]
  %s2 = inlined_call_operand.vmem [shape: f32[5,10], index: 2, kind: input, shape index: {}]
  %s3 = inlined_call_operand.vmem [shape: f32[1,5], index: 3, kind: input, shape index: {}]
  %s4 = inlined_call_operand.vmem [shape: f32[10,3], index: 4, kind: input, shape index: {}]
  %s5 = inlined_call_operand.vmem [shape: f32[1,256], index: 5, kind: output, shape index: {}]
  %s6 = sld [smem:[#allocation0]]
  $region53: #{churn_model_forward.1} parent=0
    _
  %s8 = ssub.s32 1, %s6
  %s9 = scalar_select 0, %s8, %s6
  loop: start=0, step=1, limit=4
  $region2: #{churn_model_forward.1} parent=0 // loop_pre_header
    _
  $region3: #{churn_model_forward.1} parent=0 // loop_header
    %s11 = sphi 0, %s15
    %p12 = scmp.ge.s32.totalorder %s11, 4
    %s21 = sphi 0, %s23
    %s24 = sphi 0, %s21
    %s25 = sphi 0, %s24
    %s41 = sphi 0, %s25
    %s45 = sphi 0, %s45
    %s47 = sphi 0, %s45
    %s48 = sphi 0, %s47
    %s62 = sphi 0, %s48
    %s66 = sphi 0, %s66
    %s68 = sphi 0, %s66
    %s69 = sphi 0, %s68
    %s83 = sphi 0, %s69
    %s87 = sphi 0, %s87
    %s89 = sphi 0, %s87
    %s90 = sphi 0, %s89
    %s104 = sphi 0, %s90
    %s108 = sphi 0, %s108
    %s110 = sphi 0, %s108
    %s111 = sphi 0, %s110
    %s125 = sphi 0, %s111
    %s131 = sphi 0, %s133
    %s134 = sphi 0, %s131
    %s135 = sphi 0, %s134
    %s151 = sphi 0, %s135
  $region4: #{churn_model_forward.1} parent=0 // loop_header_branch
    %14 = sbr.rel (%p12) target = $region8
  $region5: #{churn_model_forward.1} parent=0 // loop_body
    %s16 = ssub.s32 %s11, 1
    %s17 = ssub.s32 %s11, 2
    %s18 = sadd.s32 %s11, 1
    %s19 = ssub.s32 %s11, %s18
    %p20 = scmp.eq.s32.totalorder %s19, 0
    %s22 = sadd.s32 %s21, 1
    %s23 = scalar_select %p20, %s21, %s22
    %p26 = pneg %p20
    %p27 = scmp.eq.s32.totalorder %s11, 1
    %p28 = por %p26, %p27
    %p29 = scmp.ne.s32.totalorder %s21, %s24
    %p30 = scmp.eq.s32.totalorder %s11, 0
    %p31 = por %p29, %p30
    %p32 = scmp.ne.s32.totalorder %s21, %s24
    %p33 = scmp.eq.s32.totalorder %s16, 1
    %p34 = por %p32, %p33
    %p35 = scmp.ne.s32.totalorder %s24, %s25
    %p36 = scmp.eq.s32.totalorder %s16, 0
    %p37 = por %p35, %p36
    %p38 = scmp.ne.s32.totalorder %s24, %s25
    %p39 = scmp.eq.s32.totalorder %s17, 1
    %p40 = por %p38, %p39
    %p42 = scmp.ne.s32.totalorder %s25, %s41
    %p43 = scmp.eq.s32.totalorder %s17, 0
    %p44 = por %p42, %p43
    %s46 = sadd.s32 %s45, 1
    %p49 = scmp.eq.s32.totalorder %s11, 1
    %p50 = scmp.ne.s32.totalorder %s45, %s47
    %p51 = scmp.eq.s32.totalorder %s11, 0
    %p52 = por %p50, %p51
    %p53 = scmp.ne.s32.totalorder %s45, %s47
    %p54 = scmp.eq.s32.totalorder %s16, 1
    %p55 = por %p53, %p54
    %p56 = scmp.ne.s32.totalorder %s47, %s48
    %p57 = scmp.eq.s32.totalorder %s16, 0
    %p58 = por %p56, %p57
    %p59 = scmp.ne.s32.totalorder %s47, %s48
    %p60 = scmp.eq.s32.totalorder %s17, 1
    %p61 = por %p59, %p60
    %p63 = scmp.ne.s32.totalorder %s48, %s62
    %p64 = scmp.eq.s32.totalorder %s17, 0
    %p65 = por %p63, %p64
    %s67 = sadd.s32 %s66, 1
    %p70 = scmp.eq.s32.totalorder %s11, 1
    %p71 = scmp.ne.s32.totalorder %s66, %s68
    %p72 = scmp.eq.s32.totalorder %s11, 0
    %p73 = por %p71, %p72
    %p74 = scmp.ne.s32.totalorder %s66, %s68
    %p75 = scmp.eq.s32.totalorder %s16, 1
    %p76 = por %p74, %p75
    %p77 = scmp.ne.s32.totalorder %s68, %s69
    %p78 = scmp.eq.s32.totalorder %s16, 0
    %p79 = por %p77, %p78
    %p80 = scmp.ne.s32.totalorder %s68, %s69
    %p81 = scmp.eq.s32.totalorder %s17, 1
    %p82 = por %p80, %p81
    %p84 = scmp.ne.s32.totalorder %s69, %s83
    %p85 = scmp.eq.s32.totalorder %s17, 0
    %p86 = por %p84, %p85
    %s88 = sadd.s32 %s87, 1
    %p91 = scmp.eq.s32.totalorder %s11, 1
    %p92 = scmp.ne.s32.totalorder %s87, %s89
    %p93 = scmp.eq.s32.totalorder %s11, 0
    %p94 = por %p92, %p93
    %p95 = scmp.ne.s32.totalorder %s87, %s89
    %p96 = scmp.eq.s32.totalorder %s16, 1
    %p97 = por %p95, %p96
    %p98 = scmp.ne.s32.totalorder %s89, %s90
    %p99 = scmp.eq.s32.totalorder %s16, 0
    %p100 = por %p98, %p99
    %p101 = scmp.ne.s32.totalorder %s89, %s90
    %p102 = scmp.eq.s32.totalorder %s17, 1
    %p103 = por %p101, %p102
    %p105 = scmp.ne.s32.totalorder %s90, %s104
    %p106 = scmp.eq.s32.totalorder %s17, 0
    %p107 = por %p105, %p106
    %s109 = sadd.s32 %s108, 1
    %p112 = scmp.eq.s32.totalorder %s11, 1
    %p113 = scmp.ne.s32.totalorder %s108, %s110
    %p114 = scmp.eq.s32.totalorder %s11, 0
    %p115 = por %p113, %p114
    %p116 = scmp.ne.s32.totalorder %s108, %s110
    %p117 = scmp.eq.s32.totalorder %s16, 1
    %p118 = por %p116, %p117
    %p119 = scmp.ne.s32.totalorder %s110, %s111
    %p120 = scmp.eq.s32.totalorder %s16, 0
    %p121 = por %p119, %p120
    %p122 = scmp.ne.s32.totalorder %s110, %s111
    %p123 = scmp.eq.s32.totalorder %s17, 1
    %p124 = por %p122, %p123
    %p126 = scmp.ne.s32.totalorder %s111, %s125
    %p127 = scmp.eq.s32.totalorder %s17, 0
    %p128 = por %p126, %p127
    %s129 = ssub.s32 %s11, %s18
    %p130 = scmp.eq.s32.totalorder %s129, 0
    %s132 = sadd.s32 %s131, 1
    %s133 = scalar_select %p130, %s131, %s132
    %p136 = pneg %p130
    %p137 = scmp.eq.s32.totalorder %s11, 1
    %p138 = por %p136, %p137
    %p139 = scmp.ne.s32.totalorder %s131, %s134
    %p140 = scmp.eq.s32.totalorder %s11, 0
    %p141 = por %p139, %p140
    %p142 = scmp.ne.s32.totalorder %s131, %s134
    %p143 = scmp.eq.s32.totalorder %s16, 1
    %p144 = por %p142, %p143
    %p145 = scmp.ne.s32.totalorder %s134, %s135
    %p146 = scmp.eq.s32.totalorder %s16, 0
    %p147 = por %p145, %p146
    %p148 = scmp.ne.s32.totalorder %s134, %s135
    %p149 = scmp.eq.s32.totalorder %s17, 1
    %p150 = por %p148, %p149
    %p152 = scmp.ne.s32.totalorder %s135, %s151
    %p153 = scmp.eq.s32.totalorder %s17, 0
    %p154 = por %p152, %p153
    %p155 = scmp.le.s32.totalorder 1, %s11
    %p156 = scmp.lt.s32.totalorder %s11, 3
    %p157 = pnand %p155, %p156
    %p158 = pneg %p157
    // Predicated region
    $region9: #{churn_model_forward.1} parent=5 // pred_check
      _
    $region10: #{churn_model_forward.1} parent=5 // pred_check_branch
      %160 = sbr.rel (%p157) target = $region12
    $region11: #{churn_model_forward.1} parent=5 // pred_region
      %s161 = ssub.s32 %s11, 1
      // Predicated region
      $region13: #{churn_model_forward.1} parent=11 // pred_check
        %p162 = pneg %p58
      $region14: #{churn_model_forward.1} parent=11 // pred_check_branch
        %164 = sbr.rel (%p162) target = $region16
      $region15: #{churn_model_forward.1} parent=11 // pred_region
        _
      $region16: #{churn_model_forward.1} parent=11 // pred_fallthru
        _
      // Predicated region
      $region17: #{churn_model_forward.1} parent=11 // pred_check
        %p165 = pneg %p79
      $region18: #{churn_model_forward.1} parent=11 // pred_check_branch
        %167 = sbr.rel (%p165) target = $region20
      $region19: #{churn_model_forward.1} parent=11 // pred_region
        _
      $region20: #{churn_model_forward.1} parent=11 // pred_fallthru
        _
      // Predicated region
      $region21: #{churn_model_forward.1} parent=11 // pred_check
        %p168 = pneg %p100
      $region22: #{churn_model_forward.1} parent=11 // pred_check_branch
        %170 = sbr.rel (%p168) target = $region24
      $region23: #{churn_model_forward.1} parent=11 // pred_region
        _
      $region24: #{churn_model_forward.1} parent=11 // pred_fallthru
        _
      // Predicated region
      $region25: #{churn_model_forward.1} parent=11 // pred_check
        %p171 = pneg %p121
      $region26: #{churn_model_forward.1} parent=11 // pred_check_branch
        %173 = sbr.rel (%p171) target = $region28
      $region27: #{churn_model_forward.1} parent=11 // pred_region
        _
      $region28: #{churn_model_forward.1} parent=11 // pred_fallthru
        _
    $region12: #{churn_model_forward.1} parent=5 // pred_fallthru
      _
    %p174 = scmp.lt.s32.totalorder %s11, 2
    // Predicated region
    $region29: #{churn_model_forward.1} parent=5 // pred_check
      %p175 = pneg %p174
    $region30: #{churn_model_forward.1} parent=5 // pred_check_branch
      %177 = sbr.rel (%p175) target = $region32
    $region31: #{churn_model_forward.1} parent=5 // pred_region
      // Predicated region
      $region33: #{churn_model_forward.1} parent=31 // pred_check
        %p178 = pneg %p31
      $region34: #{churn_model_forward.1} parent=31 // pred_check_branch
        %180 = sbr.rel (%p178) target = $region36
      $region35: #{churn_model_forward.1} parent=31 // pred_region
        %s181 = smul.u32 16, %s11
        %p182 = scmp.lt.s32.totalorder %s181, 31
        %s183 = scalar_select %p182, %s181, 31
        %s184 = smul.addr %s183, 8
        %s185 = scalar_lea.vmem %s0, %s184
        %s186 = smul.u32 16, %s11
      $region36: #{churn_model_forward.1} parent=31 // pred_fallthru
        _
    $region32: #{churn_model_forward.1} parent=5 // pred_fallthru
      _
    %p187 = scmp.le.s32.totalorder 1, %s11
    %p188 = scmp.lt.s32.totalorder %s11, 3
    %p189 = pnand %p187, %p188
    %p190 = pneg %p189
    // Predicated region
    $region37: #{churn_model_forward.1} parent=5 // pred_check
      _
    $region38: #{churn_model_forward.1} parent=5 // pred_check_branch
      %192 = sbr.rel (%p189) target = $region40
    $region39: #{churn_model_forward.1} parent=5 // pred_region
      %s193 = ssub.s32 %s11, 1
      %s194 = smul.u32 16, %s16
      %p195 = scmp.lt.s32.totalorder %s194, 31
      %s196 = scalar_select %p195, %s194, 31
      %s197 = smul.addr %s196, 8
      %s198 = scalar_lea.vmem %s0, %s197
      %p199 = pneg %p37
      %p200 = pneg %p34
      %p201 = pneg %p58
      %p202 = pneg %p55
      %p203 = pneg %p79
      %p204 = pneg %p76
      %p205 = pneg %p100
      %p206 = pneg %p97
      %p207 = pneg %p121
      %p208 = pneg %p118
      %p209 = pneg %p147
      %p210 = pneg %p144
      %p211 = scmp.lt.s32.totalorder %s16, 1
      %s212 = scalar_select %p211, %s16, 1
      %s213 = scalar_lea.vmem %s5, %s212
      %s214 = smul.u32 16, %s16
      %p215 = scmp.lt.s32.totalorder %s214, 31
      %s216 = scalar_select %p215, %s214, 31
      %s217 = smul.addr %s216, 8
      %s218 = scalar_lea.vmem %s0, %s217
      %s219 = smul.u32 16, %s16
      %p220 = scmp.lt.s32.totalorder %s16, 1
      %s221 = scalar_select %p220, %s16, 1
      %s222 = scalar_lea.vmem %s5, %s221
      %v223 = vld [vmem:[%s218] sm:$0xff]
      %v224 = vld [vmem:[%s218 + $0x8] sm:$0xff]
      %v225 = vld [vmem:[%s218 + $0x10] sm:$0xff]
      %v226 = vld [vmem:[%s218 + $0x18] sm:$0xff]
      %v227 = vld [vmem:[%s218 + $0x20] sm:$0xff]
      %v228 = vld [vmem:[%s218 + $0x28] sm:$0xff]
      %v229 = vld [vmem:[%s218 + $0x30] sm:$0xff]
      %v230 = vld [vmem:[%s218 + $0x38] sm:$0xff]
      %v231 = vld [vmem:[%s218 + $0x40] sm:$0xff]
      %v232 = vld [vmem:[%s218 + $0x48] sm:$0xff]
      %v233 = vld [vmem:[%s218 + $0x50] sm:$0xff]
      %v234 = vld [vmem:[%s218 + $0x58] sm:$0xff]
      %v235 = vld [vmem:[%s218 + $0x60] sm:$0xff]
      %v236 = vld [vmem:[%s218 + $0x68] sm:$0xff]
      %v237 = vld [vmem:[%s218 + $0x70] sm:$0xff]
      %v238 = vld [vmem:[%s218 + $0x78] sm:$0xff]
      %v239 = vld [vmem:[%s4] sm:$0xff]
      %v240 = vld [vmem:[%s4 + $0x8] sm:$0x3]
      %v241 = vld [vmem:[%s4] sm:$0x1f]
      %v242 = vld [vmem:[%s4] sm:$0x1]
      %v243 = vld [vmem:[%s1] sm:$0xff]
      %v244 = vld [vmem:[%s1 + $0x8] sm:$0x3]
      %246 = vset.pattern.permute.xlu0 0
      %247 = vperm.xlu0 %246, %v239
      %v248 = vpop.permute.xlu0 %247
      %251 = vset.pattern.permute.xlu0 0
      %252 = vperm.xlu0 %251, %v240
      %v253 = vpop.permute.xlu0 %252
      %vm255 = vcmask 97280
      %v257 = vsel %vm255, %v243, 0
      %v260 = vsel %vm255, %v244, 0
      %v263 = vsel %vm255, %v223, 0
      %v266 = vsel %vm255, %v224, 0
      %v269 = vsel %vm255, %v225, 0
      %v272 = vsel %vm255, %v226, 0
      %v275 = vsel %vm255, %v227, 0
      %v278 = vsel %vm255, %v228, 0
      %v281 = vsel %vm255, %v229, 0
      %v284 = vsel %vm255, %v230, 0
      %v287 = vsel %vm255, %v231, 0
      %v290 = vsel %vm255, %v232, 0
      %v293 = vsel %vm255, %v233, 0
      %v296 = vsel %vm255, %v234, 0
      %v299 = vsel %vm255, %v235, 0
      %v302 = vsel %vm255, %v236, 0
      %v305 = vsel %vm255, %v237, 0
      %v308 = vsel %vm255, %v238, 0
      %310 = vmatprep.subr.mxu0 0.0
      %311 = vmatpush1.xpose.msra.mxu0 %v263
      %312 = vmatprep.subr.mxu0 0.0
      %313 = vmatpush1.xpose.msra.mxu0 %v266
      %314 = vmatprep.subr.mxu0 0.0
      %315 = vmatpush1.xpose.msra.mxu0 %v269
      %316 = vmatprep.subr.mxu0 0.0
      %317 = vmatpush1.xpose.msra.mxu0 %v272
      %318 = vmatprep.subr.mxu0 0.0
      %319 = vmatpush1.xpose.msra.mxu0 %v275
      %320 = vmatprep.subr.mxu0 0.0
      %321 = vmatpush1.xpose.msra.mxu0 %v278
      %322 = vmatprep.subr.mxu0 0.0
      %323 = vmatpush1.xpose.msra.mxu0 %v281
      %324 = vmatprep.subr.mxu0 0.0
      %325 = vmatpush1.xpose.msra.mxu0 %v284
      %326 = vmatprep.subr.mxu0 0.0
      %327 = vmatpush1.xpose.msra.mxu0 %v287
      %328 = vmatprep.subr.mxu0 0.0
      %329 = vmatpush1.xpose.msra.mxu0 %v290
      %330 = vmatprep.subr.mxu0 0.0
      %331 = vmatpush1.xpose.msra.mxu0 %v293
      %332 = vmatprep.subr.mxu0 0.0
      %333 = vmatpush1.xpose.msra.mxu0 %v296
      %334 = vmatprep.subr.mxu0 0.0
      %335 = vmatpush1.xpose.msra.mxu0 %v299
      %336 = vmatprep.subr.mxu0 0.0
      %337 = vmatpush1.xpose.msra.mxu0 %v302
      %338 = vmatprep.subr.mxu0 0.0
      %339 = vmatpush1.xpose.msra.mxu0 %v305
      %340 = vmatprep.subr.mxu0 0.0
      %341 = vmatpush1.xpose.msra.mxu0 %v308
      %342 = vmatprep.subr.mxu0 0.0
      %343 = vmatpush1.xpose.msra.mxu0 0.0
      %344 = vmatprep.subr.mxu0 0.0
      %345 = vmatpush1.xpose.msra.mxu0 0.0
      %346 = vmatprep.subr.mxu0 0.0
      %347 = vmatpush1.xpose.msra.mxu0 0.0
      %348 = vmatprep.subr.mxu0 0.0
      %349 = vmatpush1.xpose.msra.mxu0 0.0
      %350 = vmatprep.subr.mxu0 0.0
      %351 = vmatpush1.xpose.msra.mxu0 0.0
      %352 = vmatprep.subr.mxu0 0.0
      %353 = vmatpush1.xpose.msra.mxu0 0.0
      %354 = vmatprep.subr.mxu0 0.0
      %355 = vmatpush1.xpose.msra.mxu0 0.0
      %356 = vmatprep.subr.mxu0 0.0
      %357 = vmatpush1.xpose.msra.mxu0 0.0
      %358 = vmatprep.subr.mxu0 0.0
      %359 = vmatpush1.xpose.msra.mxu0 0.0
      %360 = vmatprep.subr.mxu0 0.0
      %361 = vmatpush1.xpose.msra.mxu0 0.0
      %362 = vmatprep.subr.mxu0 0.0
      %363 = vmatpush1.xpose.msra.mxu0 0.0
      %364 = vmatprep.subr.mxu0 0.0
      %365 = vmatpush1.xpose.msra.mxu0 0.0
      %366 = vmatprep.subr.mxu0 0.0
      %367 = vmatpush1.xpose.msra.mxu0 0.0
      %368 = vmatprep.subr.mxu0 0.0
      %369 = vmatpush1.xpose.msra.mxu0 0.0
      %370 = vmatprep.subr.mxu0 0.0
      %371 = vmatpush1.xpose.msra.mxu0 0.0
      %372 = vmatprep.subr.mxu0 0.0
      %373 = vmatpush1.xpose.msra.mxu0 0.0
      %374 = vmatprep.mubr.f32.mxu0 0.0
      %375 = vmatmul.mubr.f32.gmra.mrb[0].mxu0 %v257
      %v376 = vpop.f32.mrb[0].mxu0
      %v377 = vadd.f32 %v248, %v376
      %v378 = vpop.f32.mrb[0].mxu0
      %379 = vmatprep.mubr.f32.mxu0 0.0
      %380 = vmatmul.mubr.f32.gmra.mrb[0].mxu0 %v260
      %v381 = vpop.f32.mrb[0].mxu0
      %v382 = vadd.f32 %v253, %v381
      %v383 = vpop.f32.mrb[0].mxu0
      %384 = vdwg.mxu0
      %v385 = vmax.f32 %v377, 0.0
      %v386 = vmax.f32 %v382, 0.0
      %v387 = vld [vmem:[%s2] sm:$0x1f]
      %389 = vset.pattern.permute.xlu0 1
      %390 = vperm.xlu0 %389, %v241
      %v391 = vpop.permute.xlu0 %390
      %vm393 = vcmask 80896
      %v395 = vsel %vm393, %v387, 0
      %vm397 = vcmask 1041408
      %v399 = vsel %vm397, %v386, 0
      %401 = vmatprep.subr.mxu0 0.0
      %402 = vmatpush1.msra.mxu0 %v385
      %403 = vmatprep.subr.mxu0 0.0
      %404 = vmatpush1.msra.mxu0 %v399
      %405 = vmatprep.subr.mxu0 0.0
      %406 = vmatpush1.msra.mxu0 0.0
      %407 = vmatprep.subr.mxu0 0.0
      %408 = vmatpush1.msra.mxu0 0.0
      %409 = vmatprep.subr.mxu0 0.0
      %410 = vmatpush1.msra.mxu0 0.0
      %411 = vmatprep.subr.mxu0 0.0
      %412 = vmatpush1.msra.mxu0 0.0
      %413 = vmatprep.subr.mxu0 0.0
      %414 = vmatpush1.msra.mxu0 0.0
      %415 = vmatprep.subr.mxu0 0.0
      %416 = vmatpush1.msra.mxu0 0.0
      %417 = vmatprep.subr.mxu0 0.0
      %418 = vmatpush1.msra.mxu0 0.0
      %419 = vmatprep.subr.mxu0 0.0
      %420 = vmatpush1.msra.mxu0 0.0
      %421 = vmatprep.subr.mxu0 0.0
      %422 = vmatpush1.msra.mxu0 0.0
      %423 = vmatprep.subr.mxu0 0.0
      %424 = vmatpush1.msra.mxu0 0.0
      %425 = vmatprep.subr.mxu0 0.0
      %426 = vmatpush1.msra.mxu0 0.0
      %427 = vmatprep.subr.mxu0 0.0
      %428 = vmatpush1.msra.mxu0 0.0
      %429 = vmatprep.subr.mxu0 0.0
      %430 = vmatpush1.msra.mxu0 0.0
      %431 = vmatprep.subr.mxu0 0.0
      %432 = vmatpush1.msra.mxu0 0.0
      %433 = vmatprep.subr.mxu0 0.0
      %434 = vmatpush1.msra.mxu0 0.0
      %435 = vmatprep.subr.mxu0 0.0
      %436 = vmatpush1.msra.mxu0 0.0
      %437 = vmatprep.subr.mxu0 0.0
      %438 = vmatpush1.msra.mxu0 0.0
      %439 = vmatprep.subr.mxu0 0.0
      %440 = vmatpush1.msra.mxu0 0.0
      %441 = vmatprep.subr.mxu0 0.0
      %442 = vmatpush1.msra.mxu0 0.0
      %443 = vmatprep.subr.mxu0 0.0
      %444 = vmatpush1.msra.mxu0 0.0
      %445 = vmatprep.subr.mxu0 0.0
      %446 = vmatpush1.msra.mxu0 0.0
      %447 = vmatprep.subr.mxu0 0.0
      %448 = vmatpush1.msra.mxu0 0.0
      %449 = vmatprep.subr.mxu0 0.0
      %450 = vmatpush1.msra.mxu0 0.0
      %451 = vmatprep.subr.mxu0 0.0
      %452 = vmatpush1.msra.mxu0 0.0
      %453 = vmatprep.subr.mxu0 0.0
      %454 = vmatpush1.msra.mxu0 0.0
      %455 = vmatprep.subr.mxu0 0.0
      %456 = vmatpush1.msra.mxu0 0.0
      %457 = vmatprep.subr.mxu0 0.0
      %458 = vmatpush1.msra.mxu0 0.0
      %459 = vmatprep.subr.mxu0 0.0
      %460 = vmatpush1.msra.mxu0 0.0
      %461 = vmatprep.subr.mxu0 0.0
      %462 = vmatpush1.msra.mxu0 0.0
      %463 = vmatprep.subr.mxu0 0.0
      %464 = vmatpush1.msra.mxu0 0.0
      %465 = vmatprep.mubr.f32.mxu0 0.0
      %466 = vmatmul.mubr.f32.gmra.mrb[0].mxu0 %v395
      %v467 = vpop.f32.mrb[0].mxu0
      %v468 = vadd.f32 %v391, %v467
      %v469 = vpop.f32.mrb[0].mxu0
      %470 = vdwg.mxu0
      %v471 = vmax.f32 %v468, 0.0
      %v472 = vld [vmem:[%s3] sm:$0x1]
      %474 = vset.pattern.permute.xlu0 2
      %475 = vperm.xlu0 %474, %v242
      %v476 = vpop.permute.xlu0 %475
      %vm478 = vcmask 39936
      %v480 = vsel %vm478, %v472, 0
      %vm482 = vcmask 1044480
      %v484 = vsel %vm482, %v471, 0
      %486 = vmatprep.subr.mxu0 0.0
      %487 = vmatpush1.msra.mxu0 %v484
      %488 = vmatprep.subr.mxu0 0.0
      %489 = vmatpush1.msra.mxu0 0.0
      %490 = vmatprep.subr.mxu0 0.0
      %491 = vmatpush1.msra.mxu0 0.0
      %492 = vmatprep.subr.mxu0 0.0
      %493 = vmatpush1.msra.mxu0 0.0
      %494 = vmatprep.subr.mxu0 0.0
      %495 = vmatpush1.msra.mxu0 0.0
      %496 = vmatprep.subr.mxu0 0.0
      %497 = vmatpush1.msra.mxu0 0.0
      %498 = vmatprep.subr.mxu0 0.0
      %499 = vmatpush1.msra.mxu0 0.0
      %500 = vmatprep.subr.mxu0 0.0
      %501 = vmatpush1.msra.mxu0 0.0
      %502 = vmatprep.subr.mxu0 0.0
      %503 = vmatpush1.msra.mxu0 0.0
      %504 = vmatprep.subr.mxu0 0.0
      %505 = vmatpush1.msra.mxu0 0.0
      %506 = vmatprep.subr.mxu0 0.0
      %507 = vmatpush1.msra.mxu0 0.0
      %508 = vmatprep.subr.mxu0 0.0
      %509 = vmatpush1.msra.mxu0 0.0
      %510 = vmatprep.subr.mxu0 0.0
      %511 = vmatpush1.msra.mxu0 0.0
      %512 = vmatprep.subr.mxu0 0.0
      %513 = vmatpush1.msra.mxu0 0.0
      %514 = vmatprep.subr.mxu0 0.0
      %515 = vmatpush1.msra.mxu0 0.0
      %516 = vmatprep.subr.mxu0 0.0
      %517 = vmatpush1.msra.mxu0 0.0
      %518 = vmatprep.subr.mxu0 0.0
      %519 = vmatpush1.msra.mxu0 0.0
      %520 = vmatprep.subr.mxu0 0.0
      %521 = vmatpush1.msra.mxu0 0.0
      %522 = vmatprep.subr.mxu0 0.0
      %523 = vmatpush1.msra.mxu0 0.0
      %524 = vmatprep.subr.mxu0 0.0
      %525 = vmatpush1.msra.mxu0 0.0
      %526 = vmatprep.subr.mxu0 0.0
      %527 = vmatpush1.msra.mxu0 0.0
      %528 = vmatprep.subr.mxu0 0.0
      %529 = vmatpush1.msra.mxu0 0.0
      %530 = vmatprep.subr.mxu0 0.0
      %531 = vmatpush1.msra.mxu0 0.0
      %532 = vmatprep.subr.mxu0 0.0
      %533 = vmatpush1.msra.mxu0 0.0
      %534 = vmatprep.subr.mxu0 0.0
      %535 = vmatpush1.msra.mxu0 0.0
      %536 = vmatprep.subr.mxu0 0.0
      %537 = vmatpush1.msra.mxu0 0.0
      %538 = vmatprep.subr.mxu0 0.0
      %539 = vmatpush1.msra.mxu0 0.0
      %540 = vmatprep.subr.mxu0 0.0
      %541 = vmatpush1.msra.mxu0 0.0
      %542 = vmatprep.subr.mxu0 0.0
      %543 = vmatpush1.msra.mxu0 0.0
      %544 = vmatprep.subr.mxu0 0.0
      %545 = vmatpush1.msra.mxu0 0.0
      %546 = vmatprep.subr.mxu0 0.0
      %547 = vmatpush1.msra.mxu0 0.0
      %548 = vmatprep.subr.mxu0 0.0
      %549 = vmatpush1.msra.mxu0 0.0
      %550 = vmatprep.mubr.f32.mxu0 0.0
      %551 = vmatmul.mubr.f32.gmra.mrb[0].mxu0 %v480
      %v552 = vpop.f32.mrb[0].mxu0
      %v553 = vadd.f32 %v476, %v552
      %v554 = vpop.f32.mrb[0].mxu0
      %555 = vdwg.mxu0
      %v556 = vsub.f32 0.0, %v553
      %v557 = vmul.f32 %v556, 1.442695
      %v558 = vpow.pop %v557
      %v559 = vadd.f32 %v558, 1.0
      %v560 = vrcp.pop %v559
      %v561 = vmul.f32 1.0, %v560
      %562 = vst [vmem:[%s222] sm:$0x1] %v561
      %p563 = scmp.lt.s32.totalorder %s16, 1
      %s564 = scalar_select %p563, %s16, 1
      %s565 = scalar_lea.vmem %s5, %s564
      // Predicated region
      $region41: #{churn_model_forward.1} parent=39 // pred_check
        %p566 = pneg %p144
      $region42: #{churn_model_forward.1} parent=39 // pred_check_branch
        %568 = sbr.rel (%p566) target = $region44
      $region43: #{churn_model_forward.1} parent=39 // pred_region
        _
      $region44: #{churn_model_forward.1} parent=39 // pred_fallthru
        _
    $region40: #{churn_model_forward.1} parent=5 // pred_fallthru
      _
    %p569 = scmp.le.s32.totalorder 2, %s11
    // Predicated region
    $region45: #{churn_model_forward.1} parent=5 // pred_check
      %p570 = pneg %p569
    $region46: #{churn_model_forward.1} parent=5 // pred_check_branch
      %572 = sbr.rel (%p570) target = $region48
    $region47: #{churn_model_forward.1} parent=5 // pred_region
      %s573 = ssub.s32 %s11, 2
      // Predicated region
      $region49: #{churn_model_forward.1} parent=47 // pred_check
        %p574 = pneg %p150
      $region50: #{churn_model_forward.1} parent=47 // pred_check_branch
        %576 = sbr.rel (%p574) target = $region52
      $region51: #{churn_model_forward.1} parent=47 // pred_region
        %p577 = scmp.lt.s32.totalorder %s17, 1
        %s578 = scalar_select %p577, %s17, 1
        %s579 = scalar_lea.vmem %s5, %s578
      $region52: #{churn_model_forward.1} parent=47 // pred_fallthru
        _
    $region48: #{churn_model_forward.1} parent=5 // pred_fallthru
      _
  $region6: #{churn_model_forward.1} parent=0 // loop_footer
    %s15 = sadd.s32 1, %s11
  $region7: #{churn_model_forward.1} parent=0 // loop_footer_branch
    %10 = sbr.rel target = $region3
  $region8: #{churn_model_forward.1} parent=0 // loop_exit
    _

</llo_original>
